<compile_context>
chip_gen: v5e
topology: v5e:2x2
jax: 0.10.0
libtpu: 0.0.40
codegen_flags: <defaults>
</compile_context>

<pallas_src>
import functools

import jax
import jax.numpy as jnp
from jax import lax
from jax.experimental import pallas as pl
from jax.experimental.pallas import tpu as pltpu

DIM_IN = 29
DIM_IN_PAD = 32            # lane-align layer-1 input channels
DIM_AUD = 64
WIN_SIZE = 16
TB_MAX = 256               # batch tile per grid step (sweep 256..2048)


def _round_up(n, m):
    return (n + m - 1) // m * m


def _leaky(x, slope=0.02):
    return jnp.where(x >= 0, x, slope * x)


def _conv_layer(hs, w, b):
    """Conv1d(k=3, s=2, p=1) + LeakyReLU(0.02) as a single MXU matmul.

    hs: list of L arrays, each (TB, Cin) f32 (per-timestep activations).
    w : (3*Cin, Cout) packed weights, row order [tap k=0 | k=1 | k=2].
    b : (1, Cout).
    Returns a list of L//2 arrays, each (TB, Cout).
    """
    l = len(hs)
    lout = l // 2
    tb, cin = hs[0].shape
    zero = jnp.zeros((tb, cin), jnp.float32)
    gs = []
    for t in range(lout):
        # taps for output t: x[2t-1], x[2t], x[2t+1]; x[-1] is the zero pad.
        left = zero if t == 0 else hs[2 * t - 1]
        gs.append(jnp.concatenate([left, hs[2 * t], hs[2 * t + 1]], axis=-1))
    g = jnp.concatenate(gs, axis=0)                    # (lout*TB, 3*Cin)
    y = _leaky(jnp.dot(g, w, preferred_element_type=jnp.float32) + b)
    return [y[t * tb:(t + 1) * tb, :] for t in range(lout)]


def audionet_kernel(x_ref,
                    w1_ref, b1_ref, w2_ref, b2_ref,
                    w3_ref, b3_ref, w4_ref, b4_ref,
                    wf1_ref, bf1_ref, wf2_ref, bf2_ref,
                    out_ref):
    # x_ref: (WIN_SIZE, TB, 32) time-major block.
    hs = [x_ref[t].astype(jnp.float32) for t in range(WIN_SIZE)]   # 16 x (TB, 32)
    hs = _conv_layer(hs, w1_ref[...], b1_ref[...])    # 8 x (TB, 32)
    hs = _conv_layer(hs, w2_ref[...], b2_ref[...])    # 4 x (TB, 32)
    hs = _conv_layer(hs, w3_ref[...], b3_ref[...])    # 2 x (TB, 64)
    hs = _conv_layer(hs, w4_ref[...], b4_ref[...])    # 1 x (TB, 64)
    h = hs[0]                                         # (TB, 64)
    # encoder_fc1: Linear(64,64) -> LeakyReLU(0.02) -> Linear(64, dim_aud)
    h = _leaky(jnp.dot(h, wf1_ref[...], preferred_element_type=jnp.float32)
               + bf1_ref[...])
    y = jnp.dot(h, wf2_ref[...], preferred_element_type=jnp.float32) + bf2_ref[...]
    out_ref[...] = y.astype(out_ref.dtype)            # (TB, 64)


def init_params(key):
    """Deterministic synthetic parameters (conv weights stored as (K, Cin, Cout))."""
    shapes = {
        "w1": (3, DIM_IN, 32), "b1": (1, 32),
        "w2": (3, 32, 32),     "b2": (1, 32),
        "w3": (3, 32, 64),     "b3": (1, 64),
        "w4": (3, 64, 64),     "b4": (1, 64),
        "wf1": (64, 64),       "bf1": (1, 64),
        "wf2": (64, DIM_AUD),  "bf2": (1, DIM_AUD),
    }
    params = {}
    for i, (name, shp) in enumerate(shapes.items()):
        k = jax.random.fold_in(key, i)
        fan_in = shp[-2] * (shp[0] if len(shp) == 3 else 1)
        scale = 1.0 / jnp.sqrt(jnp.float32(fan_in))
        params[name] = (jax.random.uniform(k, shp, jnp.float32, -1.0, 1.0) * scale)
    return params


def _pack_conv_weight(w, cin_pad=None):
    """(3, Cin, Cout) -> (3*Cin', Cout), zero-padding Cin to cin_pad if given."""
    k, cin, cout = w.shape
    if cin_pad is not None and cin_pad > cin:
        w = jnp.pad(w, ((0, 0), (0, cin_pad - cin), (0, 0)))
        cin = cin_pad
    return w.reshape(k * cin, cout)


@jax.jit
def audionet_forward(x, params):
    """x: (B, 29, T) NCW, T >= 16. Returns (B, dim_aud)."""
    half_w = WIN_SIZE // 2
    x = x[:, :, 8 - half_w: 8 + half_w]               # (B, 29, 16)
    x = jnp.transpose(x, (2, 0, 1))                   # (16, B, 29)  time-major
    x = jnp.pad(x, ((0, 0), (0, 0), (0, DIM_IN_PAD - DIM_IN)))   # (16, B, 32)

    B = x.shape[1]
    tb = min(TB_MAX, _round_up(B, 8))                 # batch tile (mult of 8)
    bp = _round_up(B, tb)
    if bp != B:
        x = jnp.pad(x, ((0, 0), (0, bp - B), (0, 0)))

    p = params
    weights = (
        _pack_conv_weight(p["w1"], DIM_IN_PAD), p["b1"],
        _pack_conv_weight(p["w2"]), p["b2"],
        _pack_conv_weight(p["w3"]), p["b3"],
        _pack_conv_weight(p["w4"]), p["b4"],
        p["wf1"], p["bf1"], p["wf2"], p["bf2"],
    )

    def full_spec(a):
        return pl.BlockSpec(a.shape, lambda i, nd=a.ndim: (0,) * nd)

    out = pl.pallas_call(
        audionet_kernel,
        out_shape=jax.ShapeDtypeStruct((bp, DIM_AUD), jnp.float32),
        grid=(bp // tb,),
        in_specs=[pl.BlockSpec((WIN_SIZE, tb, DIM_IN_PAD), lambda i: (0, i, 0))]
                + [full_spec(a) for a in weights],
        out_specs=pl.BlockSpec((tb, DIM_AUD), lambda i: (i, 0)),
        compiler_params=pltpu.CompilerParams(
            dimension_semantics=("parallel",)),
    )(x, *weights)
    return out[:B]


def audionet_reference(x, params):
    """Pure-JAX reference matching PyTorch semantics (NCW convs)."""
    half_w = WIN_SIZE // 2
    h = x[:, :, 8 - half_w: 8 + half_w]               # (B, 29, 16)
    for wn, bn in (("w1", "b1"), ("w2", "b2"), ("w3", "b3"), ("w4", "b4")):
        w = jnp.transpose(params[wn], (2, 1, 0))      # (K,Cin,Cout) -> (Cout,Cin,K)
        h = lax.conv_general_dilated(
            h, w, window_strides=(2,), padding=[(1, 1)],
            dimension_numbers=("NCH", "OIH", "NCH"))
        h = h + params[bn][0][None, :, None]
        h = jnp.where(h >= 0, h, 0.02 * h)
    h = h[:, :, 0]                                    # squeeze(-1) -> (B, 64)
    h = h @ params["wf1"] + params["bf1"]
    h = jnp.where(h >= 0, h, 0.02 * h)
    return h @ params["wf2"] + params["bf2"]


if __name__ == "__main__":
    key = jax.random.PRNGKey(0)
    kx, kp = jax.random.split(key)

    B, T = 2, 16
    x = jax.random.normal(kx, (B, DIM_IN, T), jnp.float32)
    params = init_params(kp)

    y = audionet_forward(x, params)
    y = jax.block_until_ready(y)

    y_ref = audionet_reference(x, params)
    assert y.shape == (B, DIM_AUD), y.shape
    err = float(jnp.max(jnp.abs(y - y_ref)))
    assert jnp.allclose(y, y_ref, atol=1e-4, rtol=1e-4), err

    print("KERNEL_OK")
</pallas_src>

<mosaic_0001>
module attributes {stable_mosaic.version = 11 : i64} {
  func.func @audionet_kernel(%arg0: i32, %arg1: memref<16x8x32xf32, #tpu.memory_space<vmem>>, %arg2: memref<96x32xf32, #tpu.memory_space<vmem>>, %arg3: memref<1x32xf32, #tpu.memory_space<vmem>>, %arg4: memref<96x32xf32, #tpu.memory_space<vmem>>, %arg5: memref<1x32xf32, #tpu.memory_space<vmem>>, %arg6: memref<96x64xf32, #tpu.memory_space<vmem>>, %arg7: memref<1x64xf32, #tpu.memory_space<vmem>>, %arg8: memref<192x64xf32, #tpu.memory_space<vmem>>, %arg9: memref<1x64xf32, #tpu.memory_space<vmem>>, %arg10: memref<64x64xf32, #tpu.memory_space<vmem>>, %arg11: memref<1x64xf32, #tpu.memory_space<vmem>>, %arg12: memref<64x64xf32, #tpu.memory_space<vmem>>, %arg13: memref<1x64xf32, #tpu.memory_space<vmem>>, %arg14: memref<8x64xf32, #tpu.memory_space<vmem>>) attributes {dimension_semantics = [#tpu.dimension_semantics<parallel>], iteration_bounds = array<i64: 1>, scalar_prefetch = 0 : i64, scratch_operands = 0 : i64, tpu.core_type = #tpu.core_type<tc>, window_params = [{transform_indices = @transform_0, window_bounds = array<i64: 16, 8, 32>}, {pipeline_mode = #tpu.pipeline_mode<synchronous>, transform_indices = @transform_1, window_bounds = array<i64: 96, 32>}, {pipeline_mode = #tpu.pipeline_mode<synchronous>, transform_indices = @transform_2, window_bounds = array<i64: 1, 32>}, {pipeline_mode = #tpu.pipeline_mode<synchronous>, transform_indices = @transform_3, window_bounds = array<i64: 96, 32>}, {pipeline_mode = #tpu.pipeline_mode<synchronous>, transform_indices = @transform_4, window_bounds = array<i64: 1, 32>}, {pipeline_mode = #tpu.pipeline_mode<synchronous>, transform_indices = @transform_5, window_bounds = array<i64: 96, 64>}, {pipeline_mode = #tpu.pipeline_mode<synchronous>, transform_indices = @transform_6, window_bounds = array<i64: 1, 64>}, {pipeline_mode = #tpu.pipeline_mode<synchronous>, transform_indices = @transform_7, window_bounds = array<i64: 192, 64>}, {pipeline_mode = #tpu.pipeline_mode<synchronous>, transform_indices = @transform_8, window_bounds = array<i64: 1, 64>}, {pipeline_mode = #tpu.pipeline_mode<synchronous>, transform_indices = @transform_9, window_bounds = array<i64: 64, 64>}, {pipeline_mode = #tpu.pipeline_mode<synchronous>, transform_indices = @transform_10, window_bounds = array<i64: 1, 64>}, {pipeline_mode = #tpu.pipeline_mode<synchronous>, transform_indices = @transform_11, window_bounds = array<i64: 64, 64>}, {pipeline_mode = #tpu.pipeline_mode<synchronous>, transform_indices = @transform_12, window_bounds = array<i64: 1, 64>}, {transform_indices = @transform_13, window_bounds = array<i64: 8, 64>}]} {
    %c0 = arith.constant 0 : index
    %c0_0 = arith.constant 0 : index
    %c0_1 = arith.constant 0 : index
    %0 = vector.load %arg1[%c0, %c0_0, %c0_1] : memref<16x8x32xf32, #tpu.memory_space<vmem>>, vector<1x8x32xf32>
    %1 = vector.shape_cast %0 : vector<1x8x32xf32> to vector<8x32xf32>
    %c1 = arith.constant 1 : index
    %c0_2 = arith.constant 0 : index
    %c0_3 = arith.constant 0 : index
    %2 = vector.load %arg1[%c1, %c0_2, %c0_3] : memref<16x8x32xf32, #tpu.memory_space<vmem>>, vector<1x8x32xf32>
    %3 = vector.shape_cast %2 : vector<1x8x32xf32> to vector<8x32xf32>
    %c2 = arith.constant 2 : index
    %c0_4 = arith.constant 0 : index
    %c0_5 = arith.constant 0 : index
    %4 = vector.load %arg1[%c2, %c0_4, %c0_5] : memref<16x8x32xf32, #tpu.memory_space<vmem>>, vector<1x8x32xf32>
    %5 = vector.shape_cast %4 : vector<1x8x32xf32> to vector<8x32xf32>
    %c3 = arith.constant 3 : index
    %c0_6 = arith.constant 0 : index
    %c0_7 = arith.constant 0 : index
    %6 = vector.load %arg1[%c3, %c0_6, %c0_7] : memref<16x8x32xf32, #tpu.memory_space<vmem>>, vector<1x8x32xf32>
    %7 = vector.shape_cast %6 : vector<1x8x32xf32> to vector<8x32xf32>
    %c4 = arith.constant 4 : index
    %c0_8 = arith.constant 0 : index
    %c0_9 = arith.constant 0 : index
    %8 = vector.load %arg1[%c4, %c0_8, %c0_9] : memref<16x8x32xf32, #tpu.memory_space<vmem>>, vector<1x8x32xf32>
    %9 = vector.shape_cast %8 : vector<1x8x32xf32> to vector<8x32xf32>
    %c5 = arith.constant 5 : index
    %c0_10 = arith.constant 0 : index
    %c0_11 = arith.constant 0 : index
    %10 = vector.load %arg1[%c5, %c0_10, %c0_11] : memref<16x8x32xf32, #tpu.memory_space<vmem>>, vector<1x8x32xf32>
    %11 = vector.shape_cast %10 : vector<1x8x32xf32> to vector<8x32xf32>
    %c6 = arith.constant 6 : index
    %c0_12 = arith.constant 0 : index
    %c0_13 = arith.constant 0 : index
    %12 = vector.load %arg1[%c6, %c0_12, %c0_13] : memref<16x8x32xf32, #tpu.memory_space<vmem>>, vector<1x8x32xf32>
    %13 = vector.shape_cast %12 : vector<1x8x32xf32> to vector<8x32xf32>
    %c7 = arith.constant 7 : index
    %c0_14 = arith.constant 0 : index
    %c0_15 = arith.constant 0 : index
    %14 = vector.load %arg1[%c7, %c0_14, %c0_15] : memref<16x8x32xf32, #tpu.memory_space<vmem>>, vector<1x8x32xf32>
    %15 = vector.shape_cast %14 : vector<1x8x32xf32> to vector<8x32xf32>
    %c8 = arith.constant 8 : index
    %c0_16 = arith.constant 0 : index
    %c0_17 = arith.constant 0 : index
    %16 = vector.load %arg1[%c8, %c0_16, %c0_17] : memref<16x8x32xf32, #tpu.memory_space<vmem>>, vector<1x8x32xf32>
    %17 = vector.shape_cast %16 : vector<1x8x32xf32> to vector<8x32xf32>
    %c9 = arith.constant 9 : index
    %c0_18 = arith.constant 0 : index
    %c0_19 = arith.constant 0 : index
    %18 = vector.load %arg1[%c9, %c0_18, %c0_19] : memref<16x8x32xf32, #tpu.memory_space<vmem>>, vector<1x8x32xf32>
    %19 = vector.shape_cast %18 : vector<1x8x32xf32> to vector<8x32xf32>
    %c10 = arith.constant 10 : index
    %c0_20 = arith.constant 0 : index
    %c0_21 = arith.constant 0 : index
    %20 = vector.load %arg1[%c10, %c0_20, %c0_21] : memref<16x8x32xf32, #tpu.memory_space<vmem>>, vector<1x8x32xf32>
    %21 = vector.shape_cast %20 : vector<1x8x32xf32> to vector<8x32xf32>
    %c11 = arith.constant 11 : index
    %c0_22 = arith.constant 0 : index
    %c0_23 = arith.constant 0 : index
    %22 = vector.load %arg1[%c11, %c0_22, %c0_23] : memref<16x8x32xf32, #tpu.memory_space<vmem>>, vector<1x8x32xf32>
    %23 = vector.shape_cast %22 : vector<1x8x32xf32> to vector<8x32xf32>
    %c12 = arith.constant 12 : index
    %c0_24 = arith.constant 0 : index
    %c0_25 = arith.constant 0 : index
    %24 = vector.load %arg1[%c12, %c0_24, %c0_25] : memref<16x8x32xf32, #tpu.memory_space<vmem>>, vector<1x8x32xf32>
    %25 = vector.shape_cast %24 : vector<1x8x32xf32> to vector<8x32xf32>
    %c13 = arith.constant 13 : index
    %c0_26 = arith.constant 0 : index
    %c0_27 = arith.constant 0 : index
    %26 = vector.load %arg1[%c13, %c0_26, %c0_27] : memref<16x8x32xf32, #tpu.memory_space<vmem>>, vector<1x8x32xf32>
    %27 = vector.shape_cast %26 : vector<1x8x32xf32> to vector<8x32xf32>
    %c14 = arith.constant 14 : index
    %c0_28 = arith.constant 0 : index
    %c0_29 = arith.constant 0 : index
    %28 = vector.load %arg1[%c14, %c0_28, %c0_29] : memref<16x8x32xf32, #tpu.memory_space<vmem>>, vector<1x8x32xf32>
    %29 = vector.shape_cast %28 : vector<1x8x32xf32> to vector<8x32xf32>
    %c15 = arith.constant 15 : index
    %c0_30 = arith.constant 0 : index
    %c0_31 = arith.constant 0 : index
    %30 = vector.load %arg1[%c15, %c0_30, %c0_31] : memref<16x8x32xf32, #tpu.memory_space<vmem>>, vector<1x8x32xf32>
    %31 = vector.shape_cast %30 : vector<1x8x32xf32> to vector<8x32xf32>
    %c0_32 = arith.constant 0 : index
    %c0_33 = arith.constant 0 : index
    %32 = vector.load %arg2[%c0_32, %c0_33] : memref<96x32xf32, #tpu.memory_space<vmem>>, vector<96x32xf32>
    %c0_34 = arith.constant 0 : index
    %c0_35 = arith.constant 0 : index
    %33 = vector.load %arg3[%c0_34, %c0_35] : memref<1x32xf32, #tpu.memory_space<vmem>>, vector<1x32xf32>
    %cst = arith.constant 0.000000e+00 : f32
    %34 = vector.broadcast %cst : f32 to vector<8x32xf32>
    %35 = tpu.concatenate %34, %1, %3 in 1 : vector<8x32xf32>, vector<8x32xf32>, vector<8x32xf32> -> vector<8x96xf32>
    %36 = tpu.concatenate %3, %5, %7 in 1 : vector<8x32xf32>, vector<8x32xf32>, vector<8x32xf32> -> vector<8x96xf32>
    %37 = tpu.concatenate %7, %9, %11 in 1 : vector<8x32xf32>, vector<8x32xf32>, vector<8x32xf32> -> vector<8x96xf32>
    %38 = tpu.concatenate %11, %13, %15 in 1 : vector<8x32xf32>, vector<8x32xf32>, vector<8x32xf32> -> vector<8x96xf32>
    %39 = tpu.concatenate %15, %17, %19 in 1 : vector<8x32xf32>, vector<8x32xf32>, vector<8x32xf32> -> vector<8x96xf32>
    %40 = tpu.concatenate %19, %21, %23 in 1 : vector<8x32xf32>, vector<8x32xf32>, vector<8x32xf32> -> vector<8x96xf32>
    %41 = tpu.concatenate %23, %25, %27 in 1 : vector<8x32xf32>, vector<8x32xf32>, vector<8x32xf32> -> vector<8x96xf32>
    %42 = tpu.concatenate %27, %29, %31 in 1 : vector<8x32xf32>, vector<8x32xf32>, vector<8x32xf32> -> vector<8x96xf32>
    %43 = tpu.concatenate %35, %36, %37, %38, %39, %40, %41, %42 in 0 : vector<8x96xf32>, vector<8x96xf32>, vector<8x96xf32>, vector<8x96xf32>, vector<8x96xf32>, vector<8x96xf32>, vector<8x96xf32>, vector<8x96xf32> -> vector<64x96xf32>
    %cst_36 = arith.constant dense<0.000000e+00> : vector<64x32xf32>
    %44 = tpu.matmul %43, %32, %cst_36 {dimension_numbers = #tpu.dot_dimension_numbers<[1], [0], [0], [1], [0, 0, 1, 1], [], []>} : vector<64x96xf32>, vector<96x32xf32>, vector<64x32xf32> -> vector<64x32xf32>
    %45 = vector.broadcast %33 : vector<1x32xf32> to vector<64x32xf32>
    %46 = arith.addf %44, %45 : vector<64x32xf32>
    %cst_37 = arith.constant 0.000000e+00 : f32
    %47 = vector.broadcast %cst_37 : f32 to vector<64x32xf32>
    %48 = arith.cmpf oge, %46, %47 : vector<64x32xf32>
    %cst_38 = arith.constant 2.000000e-02 : f32
    %49 = vector.broadcast %cst_38 : f32 to vector<64x32xf32>
    %50 = arith.mulf %49, %46 : vector<64x32xf32>
    %51 = arith.select %48, %46, %50 : vector<64x32xi1>, vector<64x32xf32>
    %52 = vector.extract_strided_slice %51 {offsets = [0, 0], sizes = [8, 32], strides = [1, 1]} : vector<64x32xf32> to vector<8x32xf32>
    %53 = vector.extract_strided_slice %51 {offsets = [8, 0], sizes = [8, 32], strides = [1, 1]} : vector<64x32xf32> to vector<8x32xf32>
    %54 = vector.extract_strided_slice %51 {offsets = [16, 0], sizes = [8, 32], strides = [1, 1]} : vector<64x32xf32> to vector<8x32xf32>
    %55 = vector.extract_strided_slice %51 {offsets = [24, 0], sizes = [8, 32], strides = [1, 1]} : vector<64x32xf32> to vector<8x32xf32>
    %56 = vector.extract_strided_slice %51 {offsets = [32, 0], sizes = [8, 32], strides = [1, 1]} : vector<64x32xf32> to vector<8x32xf32>
    %57 = vector.extract_strided_slice %51 {offsets = [40, 0], sizes = [8, 32], strides = [1, 1]} : vector<64x32xf32> to vector<8x32xf32>
    %58 = vector.extract_strided_slice %51 {offsets = [48, 0], sizes = [8, 32], strides = [1, 1]} : vector<64x32xf32> to vector<8x32xf32>
    %59 = vector.extract_strided_slice %51 {offsets = [56, 0], sizes = [8, 32], strides = [1, 1]} : vector<64x32xf32> to vector<8x32xf32>
    %c0_39 = arith.constant 0 : index
    %c0_40 = arith.constant 0 : index
    %60 = vector.load %arg4[%c0_39, %c0_40] : memref<96x32xf32, #tpu.memory_space<vmem>>, vector<96x32xf32>
    %c0_41 = arith.constant 0 : index
    %c0_42 = arith.constant 0 : index
    %61 = vector.load %arg5[%c0_41, %c0_42] : memref<1x32xf32, #tpu.memory_space<vmem>>, vector<1x32xf32>
    %cst_43 = arith.constant 0.000000e+00 : f32
    %62 = vector.broadcast %cst_43 : f32 to vector<8x32xf32>
    %63 = tpu.concatenate %62, %52, %53 in 1 : vector<8x32xf32>, vector<8x32xf32>, vector<8x32xf32> -> vector<8x96xf32>
    %64 = tpu.concatenate %53, %54, %55 in 1 : vector<8x32xf32>, vector<8x32xf32>, vector<8x32xf32> -> vector<8x96xf32>
    %65 = tpu.concatenate %55, %56, %57 in 1 : vector<8x32xf32>, vector<8x32xf32>, vector<8x32xf32> -> vector<8x96xf32>
    %66 = tpu.concatenate %57, %58, %59 in 1 : vector<8x32xf32>, vector<8x32xf32>, vector<8x32xf32> -> vector<8x96xf32>
    %67 = tpu.concatenate %63, %64, %65, %66 in 0 : vector<8x96xf32>, vector<8x96xf32>, vector<8x96xf32>, vector<8x96xf32> -> vector<32x96xf32>
    %cst_44 = arith.constant dense<0.000000e+00> : vector<32x32xf32>
    %68 = tpu.matmul %67, %60, %cst_44 {dimension_numbers = #tpu.dot_dimension_numbers<[1], [0], [0], [1], [0, 0, 1, 1], [], []>} : vector<32x96xf32>, vector<96x32xf32>, vector<32x32xf32> -> vector<32x32xf32>
    %69 = vector.broadcast %61 : vector<1x32xf32> to vector<32x32xf32>
    %70 = arith.addf %68, %69 : vector<32x32xf32>
    %cst_45 = arith.constant 0.000000e+00 : f32
    %71 = vector.broadcast %cst_45 : f32 to vector<32x32xf32>
    %72 = arith.cmpf oge, %70, %71 : vector<32x32xf32>
    %cst_46 = arith.constant 2.000000e-02 : f32
    %73 = vector.broadcast %cst_46 : f32 to vector<32x32xf32>
    %74 = arith.mulf %73, %70 : vector<32x32xf32>
    %75 = arith.select %72, %70, %74 : vector<32x32xi1>, vector<32x32xf32>
    %76 = vector.extract_strided_slice %75 {offsets = [0, 0], sizes = [8, 32], strides = [1, 1]} : vector<32x32xf32> to vector<8x32xf32>
    %77 = vector.extract_strided_slice %75 {offsets = [8, 0], sizes = [8, 32], strides = [1, 1]} : vector<32x32xf32> to vector<8x32xf32>
    %78 = vector.extract_strided_slice %75 {offsets = [16, 0], sizes = [8, 32], strides = [1, 1]} : vector<32x32xf32> to vector<8x32xf32>
    %79 = vector.extract_strided_slice %75 {offsets = [24, 0], sizes = [8, 32], strides = [1, 1]} : vector<32x32xf32> to vector<8x32xf32>
    %c0_47 = arith.constant 0 : index
    %c0_48 = arith.constant 0 : index
    %80 = vector.load %arg6[%c0_47, %c0_48] : memref<96x64xf32, #tpu.memory_space<vmem>>, vector<96x64xf32>
    %c0_49 = arith.constant 0 : index
    %c0_50 = arith.constant 0 : index
    %81 = vector.load %arg7[%c0_49, %c0_50] : memref<1x64xf32, #tpu.memory_space<vmem>>, vector<1x64xf32>
    %cst_51 = arith.constant 0.000000e+00 : f32
    %82 = vector.broadcast %cst_51 : f32 to vector<8x32xf32>
    %83 = tpu.concatenate %82, %76, %77 in 1 : vector<8x32xf32>, vector<8x32xf32>, vector<8x32xf32> -> vector<8x96xf32>
    %84 = tpu.concatenate %77, %78, %79 in 1 : vector<8x32xf32>, vector<8x32xf32>, vector<8x32xf32> -> vector<8x96xf32>
    %85 = tpu.concatenate %83, %84 in 0 : vector<8x96xf32>, vector<8x96xf32> -> vector<16x96xf32>
    %cst_52 = arith.constant dense<0.000000e+00> : vector<16x64xf32>
    %86 = tpu.matmul %85, %80, %cst_52 {dimension_numbers = #tpu.dot_dimension_numbers<[1], [0], [0], [1], [0, 0, 1, 1], [], []>} : vector<16x96xf32>, vector<96x64xf32>, vector<16x64xf32> -> vector<16x64xf32>
    %87 = vector.broadcast %81 : vector<1x64xf32> to vector<16x64xf32>
    %88 = arith.addf %86, %87 : vector<16x64xf32>
    %cst_53 = arith.constant 0.000000e+00 : f32
    %89 = vector.broadcast %cst_53 : f32 to vector<16x64xf32>
    %90 = arith.cmpf oge, %88, %89 : vector<16x64xf32>
    %cst_54 = arith.constant 2.000000e-02 : f32
    %91 = vector.broadcast %cst_54 : f32 to vector<16x64xf32>
    %92 = arith.mulf %91, %88 : vector<16x64xf32>
    %93 = arith.select %90, %88, %92 : vector<16x64xi1>, vector<16x64xf32>
    %94 = vector.extract_strided_slice %93 {offsets = [0, 0], sizes = [8, 64], strides = [1, 1]} : vector<16x64xf32> to vector<8x64xf32>
    %95 = vector.extract_strided_slice %93 {offsets = [8, 0], sizes = [8, 64], strides = [1, 1]} : vector<16x64xf32> to vector<8x64xf32>
    %c0_55 = arith.constant 0 : index
    %c0_56 = arith.constant 0 : index
    %96 = vector.load %arg8[%c0_55, %c0_56] : memref<192x64xf32, #tpu.memory_space<vmem>>, vector<192x64xf32>
    %c0_57 = arith.constant 0 : index
    %c0_58 = arith.constant 0 : index
    %97 = vector.load %arg9[%c0_57, %c0_58] : memref<1x64xf32, #tpu.memory_space<vmem>>, vector<1x64xf32>
    %cst_59 = arith.constant 0.000000e+00 : f32
    %98 = vector.broadcast %cst_59 : f32 to vector<8x64xf32>
    %99 = tpu.concatenate %98, %94, %95 in 1 : vector<8x64xf32>, vector<8x64xf32>, vector<8x64xf32> -> vector<8x192xf32>
    %cst_60 = arith.constant dense<0.000000e+00> : vector<8x64xf32>
    %100 = tpu.matmul %99, %96, %cst_60 {dimension_numbers = #tpu.dot_dimension_numbers<[1], [0], [0], [1], [0, 0, 1, 1], [], []>} : vector<8x192xf32>, vector<192x64xf32>, vector<8x64xf32> -> vector<8x64xf32>
    %101 = vector.broadcast %97 : vector<1x64xf32> to vector<8x64xf32>
    %102 = arith.addf %100, %101 : vector<8x64xf32>
    %cst_61 = arith.constant 0.000000e+00 : f32
    %103 = vector.broadcast %cst_61 : f32 to vector<8x64xf32>
    %104 = arith.cmpf oge, %102, %103 : vector<8x64xf32>
    %cst_62 = arith.constant 2.000000e-02 : f32
    %105 = vector.broadcast %cst_62 : f32 to vector<8x64xf32>
    %106 = arith.mulf %105, %102 : vector<8x64xf32>
    %107 = arith.select %104, %102, %106 : vector<8x64xi1>, vector<8x64xf32>
    %c0_63 = arith.constant 0 : index
    %c0_64 = arith.constant 0 : index
    %108 = vector.load %arg10[%c0_63, %c0_64] : memref<64x64xf32, #tpu.memory_space<vmem>>, vector<64x64xf32>
    %cst_65 = arith.constant dense<0.000000e+00> : vector<8x64xf32>
    %109 = tpu.matmul %107, %108, %cst_65 {dimension_numbers = #tpu.dot_dimension_numbers<[1], [0], [0], [1], [0, 0, 1, 1], [], []>} : vector<8x64xf32>, vector<64x64xf32>, vector<8x64xf32> -> vector<8x64xf32>
    %c0_66 = arith.constant 0 : index
    %c0_67 = arith.constant 0 : index
    %110 = vector.load %arg11[%c0_66, %c0_67] : memref<1x64xf32, #tpu.memory_space<vmem>>, vector<1x64xf32>
    %111 = vector.broadcast %110 : vector<1x64xf32> to vector<8x64xf32>
    %112 = arith.addf %109, %111 : vector<8x64xf32>
    %cst_68 = arith.constant 0.000000e+00 : f32
    %113 = vector.broadcast %cst_68 : f32 to vector<8x64xf32>
    %114 = arith.cmpf oge, %112, %113 : vector<8x64xf32>
    %cst_69 = arith.constant 2.000000e-02 : f32
    %115 = vector.broadcast %cst_69 : f32 to vector<8x64xf32>
    %116 = arith.mulf %115, %112 : vector<8x64xf32>
    %117 = arith.select %114, %112, %116 : vector<8x64xi1>, vector<8x64xf32>
    %c0_70 = arith.constant 0 : index
    %c0_71 = arith.constant 0 : index
    %118 = vector.load %arg12[%c0_70, %c0_71] : memref<64x64xf32, #tpu.memory_space<vmem>>, vector<64x64xf32>
    %cst_72 = arith.constant dense<0.000000e+00> : vector<8x64xf32>
    %119 = tpu.matmul %117, %118, %cst_72 {dimension_numbers = #tpu.dot_dimension_numbers<[1], [0], [0], [1], [0, 0, 1, 1], [], []>} : vector<8x64xf32>, vector<64x64xf32>, vector<8x64xf32> -> vector<8x64xf32>
    %c0_73 = arith.constant 0 : index
    %c0_74 = arith.constant 0 : index
    %120 = vector.load %arg13[%c0_73, %c0_74] : memref<1x64xf32, #tpu.memory_space<vmem>>, vector<1x64xf32>
    %121 = vector.broadcast %120 : vector<1x64xf32> to vector<8x64xf32>
    %122 = arith.addf %119, %121 : vector<8x64xf32>
    %c0_75 = arith.constant 0 : index
    %c0_76 = arith.constant 0 : index
    %123 = vector.load %arg14[%c0_75, %c0_76] : memref<8x64xf32, #tpu.memory_space<vmem>>, vector<8x64xf32>
    tpu.vector_store %arg14[%c0_75, %c0_76], %122 {strides = array<i32>} : memref<8x64xf32, #tpu.memory_space<vmem>>, vector<8x64xf32>,
    return
  }
  func.func @transform_0(%arg0: i32) -> (i32, i32, i32) {
    %c0_i32 = arith.constant 0 : i32
    %c0_i32_0 = arith.constant 0 : i32
    %c0_i32_1 = arith.constant 0 : i32
    return %c0_i32, %arg0, %c0_i32_0 : i32, i32, i32
  }
  func.func @transform_1(%arg0: i32) -> (i32, i32) {
    %c0_i32 = arith.constant 0 : i32
    %c0_i32_0 = arith.constant 0 : i32
    %c0_i32_1 = arith.constant 0 : i32
    return %c0_i32, %c0_i32_0 : i32, i32
  }
  func.func @transform_2(%arg0: i32) -> (i32, i32) {
    %c0_i32 = arith.constant 0 : i32
    %c0_i32_0 = arith.constant 0 : i32
    %c0_i32_1 = arith.constant 0 : i32
    return %c0_i32, %c0_i32_0 : i32, i32
  }
  func.func @transform_3(%arg0: i32) -> (i32, i32) {
    %c0_i32 = arith.constant 0 : i32
    %c0_i32_0 = arith.constant 0 : i32
    %c0_i32_1 = arith.constant 0 : i32
    return %c0_i32, %c0_i32_0 : i32, i32
  }
  func.func @transform_4(%arg0: i32) -> (i32, i32) {
    %c0_i32 = arith.constant 0 : i32
    %c0_i32_0 = arith.constant 0 : i32
    %c0_i32_1 = arith.constant 0 : i32
    return %c0_i32, %c0_i32_0 : i32, i32
  }
  func.func @transform_5(%arg0: i32) -> (i32, i32) {
    %c0_i32 = arith.constant 0 : i32
    %c0_i32_0 = arith.constant 0 : i32
    %c0_i32_1 = arith.constant 0 : i32
    return %c0_i32, %c0_i32_0 : i32, i32
  }
  func.func @transform_6(%arg0: i32) -> (i32, i32) {
    %c0_i32 = arith.constant 0 : i32
    %c0_i32_0 = arith.constant 0 : i32
    %c0_i32_1 = arith.constant 0 : i32
    return %c0_i32, %c0_i32_0 : i32, i32
  }
  func.func @transform_7(%arg0: i32) -> (i32, i32) {
    %c0_i32 = arith.constant 0 : i32
    %c0_i32_0 = arith.constant 0 : i32
    %c0_i32_1 = arith.constant 0 : i32
    return %c0_i32, %c0_i32_0 : i32, i32
  }
  func.func @transform_8(%arg0: i32) -> (i32, i32) {
    %c0_i32 = arith.constant 0 : i32
    %c0_i32_0 = arith.constant 0 : i32
    %c0_i32_1 = arith.constant 0 : i32
    return %c0_i32, %c0_i32_0 : i32, i32
  }
  func.func @transform_9(%arg0: i32) -> (i32, i32) {
    %c0_i32 = arith.constant 0 : i32
    %c0_i32_0 = arith.constant 0 : i32
    %c0_i32_1 = arith.constant 0 : i32
    return %c0_i32, %c0_i32_0 : i32, i32
  }
  func.func @transform_10(%arg0: i32) -> (i32, i32) {
    %c0_i32 = arith.constant 0 : i32
    %c0_i32_0 = arith.constant 0 : i32
    %c0_i32_1 = arith.constant 0 : i32
    return %c0_i32, %c0_i32_0 : i32, i32
  }
  func.func @transform_11(%arg0: i32) -> (i32, i32) {
    %c0_i32 = arith.constant 0 : i32
    %c0_i32_0 = arith.constant 0 : i32
    %c0_i32_1 = arith.constant 0 : i32
    return %c0_i32, %c0_i32_0 : i32, i32
  }
  func.func @transform_12(%arg0: i32) -> (i32, i32) {
    %c0_i32 = arith.constant 0 : i32
    %c0_i32_0 = arith.constant 0 : i32
    %c0_i32_1 = arith.constant 0 : i32
    return %c0_i32, %c0_i32_0 : i32, i32
  }
  func.func @transform_13(%arg0: i32) -> (i32, i32) {
    %c0_i32 = arith.constant 0 : i32
    %c0_i32_0 = arith.constant 0 : i32
    return %arg0, %c0_i32 : i32, i32
  }
}

</mosaic_0001>

<llo_original>
// kernel: audionet_forward.1
$region0: #{audionet_forward.1}
  #allocation0 [shape = 'u32[]', space=smem, size = 0x4, offset = 0x4, fixed_abs, tag = 'smem constant byte address 0x4 - core index']
  #allocation1 [shape = 'u32[72,128]{1,0:T(1,128)}', space=vmem, size = 0x9000, scoped, tag = 'internal scratch']
  %s0 = inlined_call_operand.vmem [shape: f32[16,8,32], index: 0, kind: input, shape index: {}]
  %s1 = inlined_call_operand.vmem [shape: f32[96,32], index: 1, kind: input, shape index: {}]
  %s2 = inlined_call_operand.vmem [shape: f32[1,32], index: 2, kind: input, shape index: {}]
  %s3 = inlined_call_operand.vmem [shape: f32[96,32], index: 3, kind: input, shape index: {}]
  %s4 = inlined_call_operand.vmem [shape: f32[1,32], index: 4, kind: input, shape index: {}]
  %s5 = inlined_call_operand.hbm [shape: f32[96,64], index: 5, kind: input, shape index: {}]
  %s6 = inlined_call_operand.vmem [shape: f32[1,64], index: 6, kind: input, shape index: {}]
  %s7 = inlined_call_operand.vmem [shape: f32[192,64], index: 7, kind: input, shape index: {}]
  %s8 = inlined_call_operand.vmem [shape: f32[1,64], index: 8, kind: input, shape index: {}]
  %s9 = inlined_call_operand.hbm [shape: f32[64,64], index: 9, kind: input, shape index: {}]
  %s10 = inlined_call_operand.vmem [shape: f32[1,64], index: 10, kind: input, shape index: {}]
  %s11 = inlined_call_operand.hbm [shape: f32[64,64], index: 11, kind: input, shape index: {}]
  %s12 = inlined_call_operand.vmem [shape: f32[1,64], index: 12, kind: input, shape index: {}]
  %s13 = inlined_call_operand.vmem [shape: f32[8,64], index: 13, kind: output, shape index: {}]
  %s14 = sld [smem:[#allocation0]]
  $region74: #{audionet_forward.1} parent=0
    _
  %s16 = ssub.s32 1, %s14
  %s17 = scalar_select 0, %s16, %s14
  $region1: #{audionet_forward.1} parent=0
    #allocation2 [shape = 'u8[49152]{0}', space=vmem, size = 0xc000, scoped, tag = 'input window, operand 5, single buffered']
    #allocation3 [shape = 's32[1]{0}', space=sflag, size = 0x4, scoped, tag = 'scoped memory for audionet_forward.1']
    #allocation4 [shape = 'u8[32768]{0}', space=vmem, size = 0x8000, scoped, tag = 'input window, operand 9, single buffered']
    #allocation5 [shape = 's32[1]{0}', space=sflag, size = 0x4, scoped, tag = 'scoped memory for audionet_forward.1']
    #allocation6 [shape = 'u8[32768]{0}', space=vmem, size = 0x8000, scoped, tag = 'input window, operand 11, single buffered']
    %18 = vsyncpa [#allocation3], 0
    %19 = vsyncpa [#allocation5], 0
    // Predicated region
    $region2: #{audionet_forward.1} parent=1 // pred_check
      _
    $region3: #{audionet_forward.1} parent=1 // pred_check_branch
      %21 = sbr.rel (0) target = $region5
    $region4: #{audionet_forward.1} parent=1 // pred_region
      _
    $region5: #{audionet_forward.1} parent=1 // pred_fallthru
      _
    // Predicated region
    $region6: #{audionet_forward.1} parent=1 // pred_check
      _
    $region7: #{audionet_forward.1} parent=1 // pred_check_branch
      %23 = sbr.rel (0) target = $region9
    $region8: #{audionet_forward.1} parent=1 // pred_region
      _
    $region9: #{audionet_forward.1} parent=1 // pred_fallthru
      _
    // Predicated region
    $region10: #{audionet_forward.1} parent=1 // pred_check
      _
    $region11: #{audionet_forward.1} parent=1 // pred_check_branch
      %25 = sbr.rel (0) target = $region13
    $region12: #{audionet_forward.1} parent=1 // pred_region
      _
    $region13: #{audionet_forward.1} parent=1 // pred_fallthru
      _
    // Predicated region
    $region14: #{audionet_forward.1} parent=1 // pred_check
      _
    $region15: #{audionet_forward.1} parent=1 // pred_check_branch
      %27 = sbr.rel (0) target = $region17
    $region16: #{audionet_forward.1} parent=1 // pred_region
      _
    $region17: #{audionet_forward.1} parent=1 // pred_fallthru
      _
    // Predicated region
    $region18: #{audionet_forward.1} parent=1 // pred_check
      _
    $region19: #{audionet_forward.1} parent=1 // pred_check_branch
      %29 = sbr.rel (0) target = $region21
    $region20: #{audionet_forward.1} parent=1 // pred_region
      _
    $region21: #{audionet_forward.1} parent=1 // pred_fallthru
      _
    // Predicated region
    $region22: #{audionet_forward.1} parent=1 // pred_check
      _
    $region23: #{audionet_forward.1} parent=1 // pred_check_branch
      %31 = sbr.rel (0) target = $region25
    $region24: #{audionet_forward.1} parent=1 // pred_region
      %33 = vsyncadd [#allocation3], 0
      %s34 = sshll.u32 %s5, 4
      %s35 = int_to_ptr.hbm [resolvable:$true] %s34
      %s36 = sshll.u32 [#allocation2], 4
      %s37 = int_to_ptr.vmem [resolvable:$true] %s36
      %42 = dma.hbm_to_vmem [thread:$0]  %s35, 1536, %s37, [#allocation3], 128, 128, 8
    $region25: #{audionet_forward.1} parent=1 // pred_fallthru
      _
    // Predicated region
    $region26: #{audionet_forward.1} parent=1 // pred_check
      _
    $region27: #{audionet_forward.1} parent=1 // pred_check_branch
      %44 = sbr.rel (0) target = $region29
    $region28: #{audionet_forward.1} parent=1 // pred_region
      _
    $region29: #{audionet_forward.1} parent=1 // pred_fallthru
      _
    // Predicated region
    $region30: #{audionet_forward.1} parent=1 // pred_check
      _
    $region31: #{audionet_forward.1} parent=1 // pred_check_branch
      %46 = sbr.rel (0) target = $region33
    $region32: #{audionet_forward.1} parent=1 // pred_region
      _
    $region33: #{audionet_forward.1} parent=1 // pred_fallthru
      _
    // Predicated region
    $region34: #{audionet_forward.1} parent=1 // pred_check
      _
    $region35: #{audionet_forward.1} parent=1 // pred_check_branch
      %48 = sbr.rel (0) target = $region37
    $region36: #{audionet_forward.1} parent=1 // pred_region
      _
    $region37: #{audionet_forward.1} parent=1 // pred_fallthru
      _
    // Predicated region
    $region38: #{audionet_forward.1} parent=1 // pred_check
      _
    $region39: #{audionet_forward.1} parent=1 // pred_check_branch
      %50 = sbr.rel (0) target = $region41
    $region40: #{audionet_forward.1} parent=1 // pred_region
      %52 = vsyncadd [#allocation5], 0
      %s53 = sshll.u32 %s9, 4
      %s54 = int_to_ptr.hbm [resolvable:$true] %s53
      %s55 = sshll.u32 [#allocation4], 4
      %s56 = int_to_ptr.vmem [resolvable:$true] %s55
      %61 = dma.hbm_to_vmem [thread:$0]  %s54, 1024, %s56, [#allocation5], 128, 128, 8
    $region41: #{audionet_forward.1} parent=1 // pred_fallthru
      _
    // Predicated region
    $region42: #{audionet_forward.1} parent=1 // pred_check
      _
    $region43: #{audionet_forward.1} parent=1 // pred_check_branch
      %63 = sbr.rel (0) target = $region45
    $region44: #{audionet_forward.1} parent=1 // pred_region
      _
    $region45: #{audionet_forward.1} parent=1 // pred_fallthru
      _
    // Predicated region
    $region46: #{audionet_forward.1} parent=1 // pred_check
      _
    $region47: #{audionet_forward.1} parent=1 // pred_check_branch
      %65 = sbr.rel (0) target = $region49
    $region48: #{audionet_forward.1} parent=1 // pred_region
      %67 = vsyncadd [#allocation5], 0
      %s68 = sshll.u32 %s11, 4
      %s69 = int_to_ptr.hbm [resolvable:$true] %s68
      %s70 = sshll.u32 [#allocation6], 4
      %s71 = int_to_ptr.vmem [resolvable:$true] %s70
      %76 = dma.hbm_to_vmem [thread:$0]  %s69, 1024, %s71, [#allocation5], 128, 128, 8
    $region49: #{audionet_forward.1} parent=1 // pred_fallthru
      _
    // Predicated region
    $region50: #{audionet_forward.1} parent=1 // pred_check
      _
    $region51: #{audionet_forward.1} parent=1 // pred_check_branch
      %78 = sbr.rel (0) target = $region53
    $region52: #{audionet_forward.1} parent=1 // pred_region
      _
    $region53: #{audionet_forward.1} parent=1 // pred_fallthru
      _
    // Predicated region
    $region54: #{audionet_forward.1} parent=1 // pred_check
      _
    $region55: #{audionet_forward.1} parent=1 // pred_check_branch
      %80 = sbr.rel (0) target = $region57
    $region56: #{audionet_forward.1} parent=1 // pred_region
      %82 = dma.done [#allocation3], 1536
    $region57: #{audionet_forward.1} parent=1 // pred_fallthru
      _
    // Predicated region
    $region58: #{audionet_forward.1} parent=1 // pred_check
      _
    $region59: #{audionet_forward.1} parent=1 // pred_check_branch
      %84 = sbr.rel (0) target = $region61
    $region60: #{audionet_forward.1} parent=1 // pred_region
      %86 = dma.done [#allocation5], 1024
    $region61: #{audionet_forward.1} parent=1 // pred_fallthru
      _
    // Predicated region
    $region62: #{audionet_forward.1} parent=1 // pred_check
      _
    $region63: #{audionet_forward.1} parent=1 // pred_check_branch
      %88 = sbr.rel (0) target = $region65
    $region64: #{audionet_forward.1} parent=1 // pred_region
      %90 = dma.done [#allocation5], 1024
    $region65: #{audionet_forward.1} parent=1 // pred_fallthru
      _
    %v91 = vld [vmem:[%s0] sm:$0xff]
    %s92 = scalar_lea.vmem %s0, 8
    %v93 = vld [vmem:[%s92] sm:$0xff]
    %s94 = scalar_lea.vmem %s0, 16
    %v95 = vld [vmem:[%s94] sm:$0xff]
    %s96 = scalar_lea.vmem %s0, 24
    %v97 = vld [vmem:[%s96] sm:$0xff]
    %s98 = scalar_lea.vmem %s0, 32
    %v99 = vld [vmem:[%s98] sm:$0xff]
    %s100 = scalar_lea.vmem %s0, 40
    %v101 = vld [vmem:[%s100] sm:$0xff]
    %s102 = scalar_lea.vmem %s0, 48
    %v103 = vld [vmem:[%s102] sm:$0xff]
    %s104 = scalar_lea.vmem %s0, 56
    %v105 = vld [vmem:[%s104] sm:$0xff]
    %s106 = scalar_lea.vmem %s0, 64
    %v107 = vld [vmem:[%s106] sm:$0xff]
    %s108 = scalar_lea.vmem %s0, 72
    %v109 = vld [vmem:[%s108] sm:$0xff]
    %s110 = scalar_lea.vmem %s0, 80
    %v111 = vld [vmem:[%s110] sm:$0xff]
    %s112 = scalar_lea.vmem %s0, 88
    %v113 = vld [vmem:[%s112] sm:$0xff]
    %s114 = scalar_lea.vmem %s0, 96
    %v115 = vld [vmem:[%s114] sm:$0xff]
    %s116 = scalar_lea.vmem %s0, 104
    %v117 = vld [vmem:[%s116] sm:$0xff]
    %s118 = scalar_lea.vmem %s0, 112
    %v119 = vld [vmem:[%s118] sm:$0xff]
    %s120 = scalar_lea.vmem %s0, 120
    %v121 = vld [vmem:[%s120] sm:$0xff]
    %v122 = vld [vmem:[%s1] sm:$0xff]
    %v123 = vld [vmem:[%s1 + $0x8] sm:$0xff]
    %v124 = vld [vmem:[%s1 + $0x10] sm:$0xff]
    %v125 = vld [vmem:[%s1 + $0x18] sm:$0xff]
    %v126 = vld [vmem:[%s1 + $0x20] sm:$0xff]
    %v127 = vld [vmem:[%s1 + $0x28] sm:$0xff]
    %v128 = vld [vmem:[%s1 + $0x30] sm:$0xff]
    %v129 = vld [vmem:[%s1 + $0x38] sm:$0xff]
    %v130 = vld [vmem:[%s1 + $0x40] sm:$0xff]
    %v131 = vld [vmem:[%s1 + $0x48] sm:$0xff]
    %v132 = vld [vmem:[%s1 + $0x50] sm:$0xff]
    %v133 = vld [vmem:[%s1 + $0x58] sm:$0xff]
    %v134 = vld [vmem:[%s2] sm:$0x1]
    %136 = vrot.lane.b32.xlu0 %v91, 32
    %v137 = vpop.permute.xlu0 %136
    %140 = vrot.lane.b32.xlu0 %v93, 64
    %v141 = vpop.permute.xlu0 %140
    %vm143 = vcmask 261120
    %v144 = vsel %vm143, 0.0, %v137
    %vm145 = vcmask 523264
    %v146 = vsel %vm145, %v144, %v141
    %148 = vrot.lane.b32.xlu0 %v95, 32
    %v149 = vpop.permute.xlu0 %148
    %152 = vrot.lane.b32.xlu0 %v97, 64
    %v153 = vpop.permute.xlu0 %152
    %v155 = vsel %vm143, %v93, %v149
    %v156 = vsel %vm145, %v155, %v153
    %158 = vrot.lane.b32.xlu0 %v99, 32
    %v159 = vpop.permute.xlu0 %158
    %162 = vrot.lane.b32.xlu0 %v101, 64
    %v163 = vpop.permute.xlu0 %162
    %v165 = vsel %vm143, %v97, %v159
    %v166 = vsel %vm145, %v165, %v163
    %168 = vrot.lane.b32.xlu0 %v103, 32
    %v169 = vpop.permute.xlu0 %168
    %172 = vrot.lane.b32.xlu0 %v105, 64
    %v173 = vpop.permute.xlu0 %172
    %v175 = vsel %vm143, %v101, %v169
    %v176 = vsel %vm145, %v175, %v173
    %178 = vrot.lane.b32.xlu0 %v107, 32
    %v179 = vpop.permute.xlu0 %178
    %182 = vrot.lane.b32.xlu0 %v109, 64
    %v183 = vpop.permute.xlu0 %182
    %v185 = vsel %vm143, %v105, %v179
    %v186 = vsel %vm145, %v185, %v183
    %188 = vrot.lane.b32.xlu0 %v111, 32
    %v189 = vpop.permute.xlu0 %188
    %192 = vrot.lane.b32.xlu0 %v113, 64
    %v193 = vpop.permute.xlu0 %192
    %v195 = vsel %vm143, %v109, %v189
    %v196 = vsel %vm145, %v195, %v193
    %198 = vrot.lane.b32.xlu0 %v115, 32
    %v199 = vpop.permute.xlu0 %198
    %202 = vrot.lane.b32.xlu0 %v117, 64
    %v203 = vpop.permute.xlu0 %202
    %v205 = vsel %vm143, %v113, %v199
    %v206 = vsel %vm145, %v205, %v203
    %208 = vrot.lane.b32.xlu0 %v119, 32
    %v209 = vpop.permute.xlu0 %208
    %212 = vrot.lane.b32.xlu0 %v121, 64
    %v213 = vpop.permute.xlu0 %212
    %v215 = vsel %vm143, %v117, %v209
    %v216 = vsel %vm145, %v215, %v213
    %v218 = vperm.slane %v134, 0
    %vm220 = vcmask 785408
    %v222 = vsel %vm220, %v146, 0
    %v225 = vsel %vm220, %v156, 0
    %v228 = vsel %vm220, %v166, 0
    %v231 = vsel %vm220, %v176, 0
    %v234 = vsel %vm220, %v186, 0
    %v237 = vsel %vm220, %v196, 0
    %v240 = vsel %vm220, %v206, 0
    %v243 = vsel %vm220, %v216, 0
    %245 = vmatpush.msra.mxu0 0.0
    %246 = vmatpush.msra.mxu0 0.0
    %247 = vmatpush.msra.mxu0 0.0
    %248 = vmatpush.msra.mxu0 0.0
    %249 = vmatpush.msra.mxu0 %v133
    %250 = vmatpush.msra.mxu0 %v132
    %251 = vmatpush.msra.mxu0 %v131
    %252 = vmatpush.msra.mxu0 %v130
    %253 = vmatpush.msra.mxu0 %v129
    %254 = vmatpush.msra.mxu0 %v128
    %255 = vmatpush.msra.mxu0 %v127
    %256 = vmatpush.msra.mxu0 %v126
    %257 = vmatpush.msra.mxu0 %v125
    %258 = vmatpush.msra.mxu0 %v124
    %259 = vmatpush.msra.mxu0 %v123
    %260 = vmatpush.msra.mxu0 %v122
    %261 = vmatmul.f32.gmra.mxu0 %v222
    %v262 = vpop.f32.mrf.mxu0
    %v263 = vadd.f32 %v218, %v262
    %264 = vmatmul.f32.gmra.mxu0 %v225
    %v265 = vpop.f32.mrf.mxu0
    %v266 = vadd.f32 %v218, %v265
    %267 = vmatmul.f32.gmra.mxu0 %v228
    %v268 = vpop.f32.mrf.mxu0
    %v269 = vadd.f32 %v218, %v268
    %270 = vmatmul.f32.gmra.mxu0 %v231
    %v271 = vpop.f32.mrf.mxu0
    %v272 = vadd.f32 %v218, %v271
    %273 = vmatmul.f32.gmra.mxu0 %v234
    %v274 = vpop.f32.mrf.mxu0
    %v275 = vadd.f32 %v218, %v274
    %276 = vmatmul.f32.gmra.mxu0 %v237
    %v277 = vpop.f32.mrf.mxu0
    %v278 = vadd.f32 %v218, %v277
    %279 = vmatmul.f32.gmra.mxu0 %v240
    %v280 = vpop.f32.mrf.mxu0
    %v281 = vadd.f32 %v218, %v280
    %282 = vmatmul.f32.gmra.mxu0 %v243
    %v283 = vpop.f32.mrf.mxu0
    %v284 = vadd.f32 %v218, %v283
    %285 = vdwg.mxu0
    %vm286 = vcmp.ge.f32.partialorder %v263, 0.0
    %vm287 = vcmp.ge.f32.partialorder %v266, 0.0
    %vm288 = vcmp.ge.f32.partialorder %v269, 0.0
    %vm289 = vcmp.ge.f32.partialorder %v272, 0.0
    %vm290 = vcmp.ge.f32.partialorder %v275, 0.0
    %vm291 = vcmp.ge.f32.partialorder %v278, 0.0
    %vm292 = vcmp.ge.f32.partialorder %v281, 0.0
    %vm293 = vcmp.ge.f32.partialorder %v284, 0.0
    %v294 = vmul.f32 %v263, 0.02
    %v295 = vmul.f32 %v266, 0.02
    %v296 = vmul.f32 %v269, 0.02
    %v297 = vmul.f32 %v272, 0.02
    %v298 = vmul.f32 %v275, 0.02
    %v299 = vmul.f32 %v278, 0.02
    %v300 = vmul.f32 %v281, 0.02
    %v301 = vmul.f32 %v284, 0.02
    %v302 = vsel %vm286, %v263, %v294
    %v303 = vsel %vm287, %v266, %v295
    %v304 = vsel %vm288, %v269, %v296
    %v305 = vsel %vm289, %v272, %v297
    %v306 = vsel %vm290, %v275, %v298
    %v307 = vsel %vm291, %v278, %v299
    %v308 = vsel %vm292, %v281, %v300
    %v309 = vsel %vm293, %v284, %v301
    %v310 = vld [vmem:[%s3] sm:$0xff]
    %v311 = vld [vmem:[%s3 + $0x8] sm:$0xff]
    %v312 = vld [vmem:[%s3 + $0x10] sm:$0xff]
    %v313 = vld [vmem:[%s3 + $0x18] sm:$0xff]
    %v314 = vld [vmem:[%s3 + $0x20] sm:$0xff]
    %v315 = vld [vmem:[%s3 + $0x28] sm:$0xff]
    %v316 = vld [vmem:[%s3 + $0x30] sm:$0xff]
    %v317 = vld [vmem:[%s3 + $0x38] sm:$0xff]
    %v318 = vld [vmem:[%s3 + $0x40] sm:$0xff]
    %v319 = vld [vmem:[%s3 + $0x48] sm:$0xff]
    %v320 = vld [vmem:[%s3 + $0x50] sm:$0xff]
    %v321 = vld [vmem:[%s3 + $0x58] sm:$0xff]
    %v322 = vld [vmem:[%s4] sm:$0x1]
    %324 = vrot.lane.b32.xlu0 %v302, 32
    %v325 = vpop.permute.xlu0 %324
    %328 = vrot.lane.b32.xlu0 %v303, 64
    %v329 = vpop.permute.xlu0 %328
    %v331 = vsel %vm143, 0.0, %v325
    %v332 = vsel %vm145, %v331, %v329
    %334 = vrot.lane.b32.xlu0 %v304, 32
    %v335 = vpop.permute.xlu0 %334
    %338 = vrot.lane.b32.xlu0 %v305, 64
    %v339 = vpop.permute.xlu0 %338
    %v341 = vsel %vm143, %v303, %v335
    %v342 = vsel %vm145, %v341, %v339
    %344 = vrot.lane.b32.xlu0 %v306, 32
    %v345 = vpop.permute.xlu0 %344
    %348 = vrot.lane.b32.xlu0 %v307, 64
    %v349 = vpop.permute.xlu0 %348
    %v351 = vsel %vm143, %v305, %v345
    %v352 = vsel %vm145, %v351, %v349
    %354 = vrot.lane.b32.xlu0 %v308, 32
    %v355 = vpop.permute.xlu0 %354
    %358 = vrot.lane.b32.xlu0 %v309, 64
    %v359 = vpop.permute.xlu0 %358
    %v361 = vsel %vm143, %v307, %v355
    %v362 = vsel %vm145, %v361, %v359
    %v364 = vperm.slane %v322, 0
    %v367 = vsel %vm220, %v332, 0
    %v370 = vsel %vm220, %v342, 0
    %v373 = vsel %vm220, %v352, 0
    %v376 = vsel %vm220, %v362, 0
    %378 = vmatpush.msra.mxu0 0.0
    %379 = vmatpush.msra.mxu0 0.0
    %380 = vmatpush.msra.mxu0 0.0
    %381 = vmatpush.msra.mxu0 0.0
    %382 = vmatpush.msra.mxu0 %v321
    %383 = vmatpush.msra.mxu0 %v320
    %384 = vmatpush.msra.mxu0 %v319
    %385 = vmatpush.msra.mxu0 %v318
    %386 = vmatpush.msra.mxu0 %v317
    %387 = vmatpush.msra.mxu0 %v316
    %388 = vmatpush.msra.mxu0 %v315
    %389 = vmatpush.msra.mxu0 %v314
    %390 = vmatpush.msra.mxu0 %v313
    %391 = vmatpush.msra.mxu0 %v312
    %392 = vmatpush.msra.mxu0 %v311
    %393 = vmatpush.msra.mxu0 %v310
    %394 = vmatmul.f32.gmra.mxu0 %v367
    %v395 = vpop.f32.mrf.mxu0
    %v396 = vadd.f32 %v364, %v395
    %397 = vmatmul.f32.gmra.mxu0 %v370
    %v398 = vpop.f32.mrf.mxu0
    %v399 = vadd.f32 %v364, %v398
    %400 = vmatmul.f32.gmra.mxu0 %v373
    %v401 = vpop.f32.mrf.mxu0
    %v402 = vadd.f32 %v364, %v401
    %403 = vmatmul.f32.gmra.mxu0 %v376
    %v404 = vpop.f32.mrf.mxu0
    %v405 = vadd.f32 %v364, %v404
    %406 = vdwg.mxu0
    %vm407 = vcmp.ge.f32.partialorder %v396, 0.0
    %vm408 = vcmp.ge.f32.partialorder %v399, 0.0
    %vm409 = vcmp.ge.f32.partialorder %v402, 0.0
    %vm410 = vcmp.ge.f32.partialorder %v405, 0.0
    %v411 = vmul.f32 %v396, 0.02
    %v412 = vmul.f32 %v399, 0.02
    %v413 = vmul.f32 %v402, 0.02
    %v414 = vmul.f32 %v405, 0.02
    %v415 = vsel %vm407, %v396, %v411
    %v416 = vsel %vm408, %v399, %v412
    %v417 = vsel %vm409, %v402, %v413
    %v418 = vsel %vm410, %v405, %v414
    %v419 = vld [vmem:[#allocation2] sm:$0xff]
    %v420 = vld [vmem:[#allocation2 + $0x8] sm:$0xff]
    %v421 = vld [vmem:[#allocation2 + $0x10] sm:$0xff]
    %v422 = vld [vmem:[#allocation2 + $0x18] sm:$0xff]
    %v423 = vld [vmem:[#allocation2 + $0x20] sm:$0xff]
    %v424 = vld [vmem:[#allocation2 + $0x28] sm:$0xff]
    %v425 = vld [vmem:[#allocation2 + $0x30] sm:$0xff]
    %v426 = vld [vmem:[#allocation2 + $0x38] sm:$0xff]
    %v427 = vld [vmem:[#allocation2 + $0x40] sm:$0xff]
    %v428 = vld [vmem:[#allocation2 + $0x48] sm:$0xff]
    %v429 = vld [vmem:[#allocation2 + $0x50] sm:$0xff]
    %v430 = vld [vmem:[#allocation2 + $0x58] sm:$0xff]
    %v431 = vld [vmem:[%s6] sm:$0x1]
    %433 = vrot.lane.b32.xlu0 %v415, 32
    %v434 = vpop.permute.xlu0 %433
    %437 = vrot.lane.b32.xlu0 %v416, 64
    %v438 = vpop.permute.xlu0 %437
    %v440 = vsel %vm143, 0.0, %v434
    %v441 = vsel %vm145, %v440, %v438
    %443 = vrot.lane.b32.xlu0 %v417, 32
    %v444 = vpop.permute.xlu0 %443
    %447 = vrot.lane.b32.xlu0 %v418, 64
    %v448 = vpop.permute.xlu0 %447
    %v450 = vsel %vm143, %v416, %v444
    %v451 = vsel %vm145, %v450, %v448
    %v453 = vperm.slane %v431, 0
    %v456 = vsel %vm220, %v441, 0
    %v459 = vsel %vm220, %v451, 0
    %461 = vmatpush.msra.mxu0 0.0
    %462 = vmatpush.msra.mxu0 0.0
    %463 = vmatpush.msra.mxu0 0.0
    %464 = vmatpush.msra.mxu0 0.0
    %465 = vmatpush.msra.mxu0 %v430
    %466 = vmatpush.msra.mxu0 %v429
    %467 = vmatpush.msra.mxu0 %v428
    %468 = vmatpush.msra.mxu0 %v427
    %469 = vmatpush.msra.mxu0 %v426
    %470 = vmatpush.msra.mxu0 %v425
    %471 = vmatpush.msra.mxu0 %v424
    %472 = vmatpush.msra.mxu0 %v423
    %473 = vmatpush.msra.mxu0 %v422
    %474 = vmatpush.msra.mxu0 %v421
    %475 = vmatpush.msra.mxu0 %v420
    %476 = vmatpush.msra.mxu0 %v419
    %477 = vmatmul.f32.gmra.mxu0 %v456
    %v478 = vpop.f32.mrf.mxu0
    %v479 = vadd.f32 %v453, %v478
    %480 = vmatmul.f32.gmra.mxu0 %v459
    %v481 = vpop.f32.mrf.mxu0
    %v482 = vadd.f32 %v453, %v481
    %483 = vdwg.mxu0
    %vm484 = vcmp.ge.f32.partialorder %v479, 0.0
    %vm485 = vcmp.ge.f32.partialorder %v482, 0.0
    %v486 = vmul.f32 %v479, 0.02
    %v487 = vmul.f32 %v482, 0.02
    %v488 = vsel %vm484, %v479, %v486
    %v489 = vsel %vm485, %v482, %v487
    %v490 = vld [vmem:[%s7] sm:$0xff]
    %v491 = vld [vmem:[%s7 + $0x8] sm:$0xff]
    %v492 = vld [vmem:[%s7 + $0x10] sm:$0xff]
    %v493 = vld [vmem:[%s7 + $0x18] sm:$0xff]
    %v494 = vld [vmem:[%s7 + $0x20] sm:$0xff]
    %v495 = vld [vmem:[%s7 + $0x28] sm:$0xff]
    %v496 = vld [vmem:[%s7 + $0x30] sm:$0xff]
    %v497 = vld [vmem:[%s7 + $0x38] sm:$0xff]
    %v498 = vld [vmem:[%s7 + $0x40] sm:$0xff]
    %v499 = vld [vmem:[%s7 + $0x48] sm:$0xff]
    %v500 = vld [vmem:[%s7 + $0x50] sm:$0xff]
    %v501 = vld [vmem:[%s7 + $0x58] sm:$0xff]
    %v502 = vld [vmem:[%s7 + $0x60] sm:$0xff]
    %v503 = vld [vmem:[%s7 + $0x68] sm:$0xff]
    %v504 = vld [vmem:[%s7 + $0x70] sm:$0xff]
    %v505 = vld [vmem:[%s7 + $0x78] sm:$0xff]
    %v506 = vld [vmem:[%s7 + $0x80] sm:$0xff]
    %v507 = vld [vmem:[%s7 + $0x88] sm:$0xff]
    %v508 = vld [vmem:[%s7 + $0x90] sm:$0xff]
    %v509 = vld [vmem:[%s7 + $0x98] sm:$0xff]
    %v510 = vld [vmem:[%s7 + $0xa0] sm:$0xff]
    %v511 = vld [vmem:[%s7 + $0xa8] sm:$0xff]
    %v512 = vld [vmem:[%s7 + $0xb0] sm:$0xff]
    %v513 = vld [vmem:[%s7 + $0xb8] sm:$0xff]
    %v514 = vld [vmem:[%s8] sm:$0x1]
    %516 = vrot.lane.b32.xlu0 %v488, 64
    %v517 = vpop.permute.xlu0 %516
    %v519 = vsel %vm145, 0.0, %v517
    %v521 = vperm.slane %v514, 0
    %v524 = vsel %vm145, %v489, 0
    %526 = vmatpush.msra.mxu0 %v505
    %527 = vmatpush.msra.mxu0 %v504
    %528 = vmatpush.msra.mxu0 %v503
    %529 = vmatpush.msra.mxu0 %v502
    %530 = vmatpush.msra.mxu0 %v501
    %531 = vmatpush.msra.mxu0 %v500
    %532 = vmatpush.msra.mxu0 %v499
    %533 = vmatpush.msra.mxu0 %v498
    %534 = vmatpush.msra.mxu0 %v497
    %535 = vmatpush.msra.mxu0 %v496
    %536 = vmatpush.msra.mxu0 %v495
    %537 = vmatpush.msra.mxu0 %v494
    %538 = vmatpush.msra.mxu0 %v493
    %539 = vmatpush.msra.mxu0 %v492
    %540 = vmatpush.msra.mxu0 %v491
    %541 = vmatpush.msra.mxu0 %v490
    %542 = vmatmul.f32.gmra.mxu0 %v519
    %v543 = vpop.f32.mrf.mxu0
    %v544 = vadd.f32 %v521, %v543
    %545 = vdwg.mxu0
    %546 = vmatpush.msra.mxu0 0.0
    %547 = vmatpush.msra.mxu0 0.0
    %548 = vmatpush.msra.mxu0 0.0
    %549 = vmatpush.msra.mxu0 0.0
    %550 = vmatpush.msra.mxu0 0.0
    %551 = vmatpush.msra.mxu0 0.0
    %552 = vmatpush.msra.mxu0 0.0
    %553 = vmatpush.msra.mxu0 0.0
    %554 = vmatpush.msra.mxu0 %v513
    %555 = vmatpush.msra.mxu0 %v512
    %556 = vmatpush.msra.mxu0 %v511
    %557 = vmatpush.msra.mxu0 %v510
    %558 = vmatpush.msra.mxu0 %v509
    %559 = vmatpush.msra.mxu0 %v508
    %560 = vmatpush.msra.mxu0 %v507
    %561 = vmatpush.msra.mxu0 %v506
    %562 = vmatmul.f32.gmra.mxu0 %v524
    %v563 = vpop.f32.mrf.mxu0
    %v564 = vadd.f32 %v544, %v563
    %565 = vdwg.mxu0
    %vm566 = vcmp.ge.f32.partialorder %v564, 0.0
    %v567 = vmul.f32 %v564, 0.02
    %v568 = vsel %vm566, %v564, %v567
    %v569 = vld [vmem:[#allocation4] sm:$0xff]
    %v570 = vld [vmem:[#allocation4 + $0x8] sm:$0xff]
    %v571 = vld [vmem:[#allocation4 + $0x10] sm:$0xff]
    %v572 = vld [vmem:[#allocation4 + $0x18] sm:$0xff]
    %v573 = vld [vmem:[#allocation4 + $0x20] sm:$0xff]
    %v574 = vld [vmem:[#allocation4 + $0x28] sm:$0xff]
    %v575 = vld [vmem:[#allocation4 + $0x30] sm:$0xff]
    %v576 = vld [vmem:[#allocation4 + $0x38] sm:$0xff]
    %v577 = vld [vmem:[%s10] sm:$0x1]
    %v579 = vperm.slane %v577, 0
    %v582 = vsel %vm145, %v568, 0
    %584 = vmatpush.msra.mxu0 0.0
    %585 = vmatpush.msra.mxu0 0.0
    %586 = vmatpush.msra.mxu0 0.0
    %587 = vmatpush.msra.mxu0 0.0
    %588 = vmatpush.msra.mxu0 0.0
    %589 = vmatpush.msra.mxu0 0.0
    %590 = vmatpush.msra.mxu0 0.0
    %591 = vmatpush.msra.mxu0 0.0
    %592 = vmatpush.msra.mxu0 %v576
    %593 = vmatpush.msra.mxu0 %v575
    %594 = vmatpush.msra.mxu0 %v574
    %595 = vmatpush.msra.mxu0 %v573
    %596 = vmatpush.msra.mxu0 %v572
    %597 = vmatpush.msra.mxu0 %v571
    %598 = vmatpush.msra.mxu0 %v570
    %599 = vmatpush.msra.mxu0 %v569
    %600 = vmatmul.f32.gmra.mxu0 %v582
    %v601 = vpop.f32.mrf.mxu0
    %v602 = vadd.f32 %v579, %v601
    %603 = vdwg.mxu0
    %vm604 = vcmp.ge.f32.partialorder %v602, 0.0
    %v605 = vmul.f32 %v602, 0.02
    %v606 = vsel %vm604, %v602, %v605
    %v607 = vld [vmem:[#allocation6] sm:$0xff]
    %v608 = vld [vmem:[#allocation6 + $0x8] sm:$0xff]
    %v609 = vld [vmem:[#allocation6 + $0x10] sm:$0xff]
    %v610 = vld [vmem:[#allocation6 + $0x18] sm:$0xff]
    %v611 = vld [vmem:[#allocation6 + $0x20] sm:$0xff]
    %v612 = vld [vmem:[#allocation6 + $0x28] sm:$0xff]
    %v613 = vld [vmem:[#allocation6 + $0x30] sm:$0xff]
    %v614 = vld [vmem:[#allocation6 + $0x38] sm:$0xff]
    %v615 = vld [vmem:[%s12] sm:$0x1]
    %v617 = vperm.slane %v615, 0
    %v620 = vsel %vm145, %v606, 0
    %622 = vmatpush.msra.mxu0 0.0
    %623 = vmatpush.msra.mxu0 0.0
    %624 = vmatpush.msra.mxu0 0.0
    %625 = vmatpush.msra.mxu0 0.0
    %626 = vmatpush.msra.mxu0 0.0
    %627 = vmatpush.msra.mxu0 0.0
    %628 = vmatpush.msra.mxu0 0.0
    %629 = vmatpush.msra.mxu0 0.0
    %630 = vmatpush.msra.mxu0 %v614
    %631 = vmatpush.msra.mxu0 %v613
    %632 = vmatpush.msra.mxu0 %v612
    %633 = vmatpush.msra.mxu0 %v611
    %634 = vmatpush.msra.mxu0 %v610
    %635 = vmatpush.msra.mxu0 %v609
    %636 = vmatpush.msra.mxu0 %v608
    %637 = vmatpush.msra.mxu0 %v607
    %638 = vmatmul.f32.gmra.mxu0 %v620
    %v639 = vpop.f32.mrf.mxu0
    %v640 = vadd.f32 %v617, %v639
    %641 = vdwg.mxu0
    %642 = vst.msk [vmem:[%s13] sm:$0xff] %vm145, %v640
    // Predicated region
    $region66: #{audionet_forward.1} parent=1 // pred_check
      _
    $region67: #{audionet_forward.1} parent=1 // pred_check_branch
      %644 = sbr.rel (0) target = $region69
    $region68: #{audionet_forward.1} parent=1 // pred_region
      _
    $region69: #{audionet_forward.1} parent=1 // pred_fallthru
      _
    // Predicated region
    $region70: #{audionet_forward.1} parent=1 // pred_check
      _
    $region71: #{audionet_forward.1} parent=1 // pred_check_branch
      %646 = sbr.rel (0) target = $region73
    $region72: #{audionet_forward.1} parent=1 // pred_region
      _
    $region73: #{audionet_forward.1} parent=1 // pred_fallthru
      _
    %647 = vsyncpa [#allocation3], 1
    %648 = vsyncpa [#allocation5], 1

</llo_original>
